<compile_context>
chip_gen: v7x
topology: tpu7x:2x2x1
jax: 0.10.0
libtpu: 0.0.40
codegen_flags: <defaults>
</compile_context>

<pallas_src>
import functools

import jax
import jax.numpy as jnp
from jax.experimental import pallas as pl
from jax.experimental.pallas import tpu as pltpu


def _round_up(v, m):
    return ((v + m - 1) // m) * m


def _wslinear_kernel(x_ref, w_ref, b_ref, o_ref, *, scale):
    # x_ref: (tm, K)   activations (original dtype or bf16, unscaled)
    # w_ref: (tn, K)   weight tile in native nn.Linear layout (out, in)
    # b_ref: (1, tn)   bias tile (f32)
    # o_ref: (tm, tn)  lane-dense output tile
    acc = jax.lax.dot_general(
        x_ref[...], w_ref[...],
        dimension_numbers=(((1,), (1,)), ((), ())),   # contract K with K (A @ B.T)
        preferred_element_type=jnp.float32,
    )
    # Fold the static weight-scale into the epilogue (VPU slot, ~free under MXU).
    o_ref[...] = (acc * scale + b_ref[...]).astype(o_ref.dtype)


def wslinear(x, weight, bias, *, block_m=256, block_n=512, mxu_dtype=jnp.bfloat16):
    """WSLinear forward: y = (x * scale) @ weight.T + bias, scale = (2/in_features)**0.5.

    x:      (M, in_features)
    weight: (out_features, in_features)   (native PyTorch nn.Linear layout)
    bias:   (out_features,)
    mxu_dtype: operand dtype for the MXU matmul (accumulation is always f32).
               Default bf16 (native MXU dtype on v5e/v6e/v7x); use jnp.float32
               for an exact reference-matching path.
    """
    M, K = x.shape
    N, K_w = weight.shape
    assert K == K_w, "weight in_features mismatch"
    scale = float((2.0 / K) ** 0.5)
    out_dtype = x.dtype

    # Cast operands once (no f32 round trip); skip the cast when already right.
    x_k = x if (mxu_dtype is None or x.dtype == mxu_dtype) else x.astype(mxu_dtype)
    w_k = weight if (mxu_dtype is None or weight.dtype == mxu_dtype) else weight.astype(mxu_dtype)
    b2d = bias.reshape(1, N).astype(jnp.float32)

    # --- tile sizes ---------------------------------------------------------
    # M tile: multiple of 8 sublanes, big enough to amortize per-step overhead,
    # capped at 256 (matches 256-wide MXU on v6e/v7x, fits v7x VMEM budgets).
    tm = min(block_m, _round_up(M, 8))
    tm = _round_up(tm, 8)
    # N tile: multiple of 128 lanes (lane-dense stores), default 512.
    tn = min(block_n, _round_up(N, 128))
    tn = _round_up(tn, 128)

    grid_m = pl.cdiv(M, tm)
    grid_n = pl.cdiv(N, tn)

    # v7x has 2 TensorCores: if the grid collapses to a single step (tiny batch),
    # split N so both cores get a tile (only when it stays lane-dense, >=128).
    if grid_m * grid_n == 1 and N >= 256:
        tn = _round_up(pl.cdiv(N, 2), 128)
        grid_n = pl.cdiv(N, tn)

    # --- explicit VMEM budget (double-buffered worst case, + headroom) -------
    vmem_need = (2 * tm * K * jnp.dtype(x_k.dtype).itemsize
                 + 2 * tn * K * jnp.dtype(w_k.dtype).itemsize
                 + 2 * tn * 4
                 + 2 * tm * tn * jnp.dtype(out_dtype).itemsize)
    vmem_limit = min(max(int(vmem_need * 1.5), 32 * 1024 * 1024), 100 * 1024 * 1024)

    kernel = functools.partial(_wslinear_kernel, scale=scale)

    # Grid: N outer (each weight tile fetched once, reused over all M tiles),
    # M inner. Both axes are independent -> "parallel" for megacore sharding.
    out = pl.pallas_call(
        kernel,
        out_shape=jax.ShapeDtypeStruct((M, N), out_dtype),
        grid_spec=pltpu.PrefetchScalarGridSpec(
            num_scalar_prefetch=0,
            grid=(grid_n, grid_m),
            in_specs=[
                pl.BlockSpec((tm, K), lambda j, i: (i, 0)),   # activations tile
                pl.BlockSpec((tn, K), lambda j, i: (j, 0)),   # weight tile (native layout)
                pl.BlockSpec((1, tn), lambda j, i: (0, j)),   # bias tile
            ],
            out_specs=pl.BlockSpec((tm, tn), lambda j, i: (i, j)),
        ),
        compiler_params=pltpu.CompilerParams(
            dimension_semantics=("parallel", "parallel"),
            vmem_limit_bytes=vmem_limit,
        ),
    )(x_k, w_k, b2d)

    return out


if __name__ == "__main__":
    key = jax.random.PRNGKey(0)
    k_x, k_w, k_b = jax.random.split(key, 3)

    # Small shapes consistent with the module: (batch, in_features) -> out_features.
    M, IN, OUT = 8, 32, 128

    x = jax.random.normal(k_x, (M, IN), dtype=jnp.float32)
    # linear.weight.data.normal_(0, 1)
    weight = jax.random.normal(k_w, (OUT, IN), dtype=jnp.float32)
    # bias: deterministic stand-in for nn.Linear's default U(-1/sqrt(in), 1/sqrt(in))
    bound = 1.0 / (IN ** 0.5)
    bias = jax.random.uniform(k_b, (OUT,), minval=-bound, maxval=bound,
                              dtype=jnp.float32)

    # Reference: exact semantics of the PyTorch module.
    scale = (2.0 / IN) ** 0.5
    ref = (x * scale) @ weight.T + bias.reshape(1, -1)

    # Exact f32 MXU path (tight tolerance).
    out_f32 = jax.block_until_ready(wslinear(x, weight, bias, mxu_dtype=jnp.float32))
    assert out_f32.shape == (M, OUT)
    assert jnp.allclose(out_f32, ref, atol=1e-4, rtol=1e-4), "f32 path mismatch vs reference"

    # Default bf16-operand path (f32 accumulation) — looser tolerance for bf16 rounding.
    out_bf16 = jax.block_until_ready(wslinear(x, weight, bias))
    assert out_bf16.shape == (M, OUT)
    assert jnp.allclose(out_bf16, ref, atol=1e-1, rtol=5e-2), "bf16 path mismatch vs reference"

    print("KERNEL_OK")
</pallas_src>

<mosaic_0001>
module attributes {stable_mosaic.version = 11 : i64} {
  func.func @_wslinear_kernel(%arg0: i32, %arg1: i32, %arg2: memref<8x32xf32, #tpu.memory_space<vmem>>, %arg3: memref<128x32xf32, #tpu.memory_space<vmem>>, %arg4: memref<1x128xf32, #tpu.memory_space<vmem>>, %arg5: memref<8x128xf32, #tpu.memory_space<vmem>>) attributes {dimension_semantics = [#tpu.dimension_semantics<parallel>, #tpu.dimension_semantics<parallel>], iteration_bounds = array<i64: 1, 1>, scalar_prefetch = 0 : i64, scratch_operands = 0 : i64, tpu.core_type = #tpu.core_type<tc>, window_params = [{transform_indices = @transform_0, window_bounds = array<i64: 8, 32>}, {transform_indices = @transform_1, window_bounds = array<i64: 128, 32>}, {transform_indices = @transform_2, window_bounds = array<i64: 1, 128>}, {transform_indices = @transform_3, window_bounds = array<i64: 8, 128>}]} {
    %c0 = arith.constant 0 : index
    %c0_0 = arith.constant 0 : index
    %0 = vector.load %arg2[%c0, %c0_0] : memref<8x32xf32, #tpu.memory_space<vmem>>, vector<8x32xf32>
    %c0_1 = arith.constant 0 : index
    %c0_2 = arith.constant 0 : index
    %1 = vector.load %arg3[%c0_1, %c0_2] : memref<128x32xf32, #tpu.memory_space<vmem>>, vector<128x32xf32>
    %cst = arith.constant dense<0.000000e+00> : vector<8x128xf32>
    %2 = tpu.matmul %0, %1, %cst {dimension_numbers = #tpu.dot_dimension_numbers<[1], [1], [0], [0], [0, 0, 1, 0], [], []>} : vector<8x32xf32>, vector<128x32xf32>, vector<8x128xf32> -> vector<8x128xf32>
    %cst_3 = arith.constant 2.500000e-01 : f32
    %3 = vector.broadcast %cst_3 : f32 to vector<8x128xf32>
    %4 = arith.mulf %2, %3 : vector<8x128xf32>
    %c0_4 = arith.constant 0 : index
    %c0_5 = arith.constant 0 : index
    %5 = vector.load %arg4[%c0_4, %c0_5] : memref<1x128xf32, #tpu.memory_space<vmem>>, vector<1x128xf32>
    %6 = vector.broadcast %5 : vector<1x128xf32> to vector<8x128xf32>
    %7 = arith.addf %4, %6 : vector<8x128xf32>
    %c0_6 = arith.constant 0 : index
    %c0_7 = arith.constant 0 : index
    %8 = vector.load %arg5[%c0_6, %c0_7] : memref<8x128xf32, #tpu.memory_space<vmem>>, vector<8x128xf32>
    tpu.vector_store %arg5[%c0_6, %c0_7], %7 {strides = array<i32>} : memref<8x128xf32, #tpu.memory_space<vmem>>, vector<8x128xf32>,
    return
  }
  func.func @transform_0(%arg0: i32, %arg1: i32) -> (i32, i32) {
    %c0_i32 = arith.constant 0 : i32
    %c0_i32_0 = arith.constant 0 : i32
    return %arg1, %c0_i32 : i32, i32
  }
  func.func @transform_1(%arg0: i32, %arg1: i32) -> (i32, i32) {
    %c0_i32 = arith.constant 0 : i32
    %c0_i32_0 = arith.constant 0 : i32
    return %arg0, %c0_i32 : i32, i32
  }
  func.func @transform_2(%arg0: i32, %arg1: i32) -> (i32, i32) {
    %c0_i32 = arith.constant 0 : i32
    %c0_i32_0 = arith.constant 0 : i32
    return %c0_i32, %arg0 : i32, i32
  }
  func.func @transform_3(%arg0: i32, %arg1: i32) -> (i32, i32) {
    %c0_i32 = arith.constant 0 : i32
    return %arg1, %arg0 : i32, i32
  }
}

</mosaic_0001>

<llo_original>
// kernel: tpu_custom_call.1
$region0: #{tpu_custom_call.1}
  #allocation0 [shape = 'u32[]', space=smem, size = 0x4, offset = 0x4, fixed_abs, tag = 'smem constant byte address 0x4 - core index']
  #allocation1 [shape = 'u32[144,128]{1,0:T(1,128)}', space=vmem, size = 0x12000, scoped, tag = 'internal scratch']
  %s0 = inlined_call_operand.vmem [shape: f32[8,32], index: 0, kind: input, shape index: {}]
  %s1 = inlined_call_operand.vmem [shape: f32[128,32], index: 1, kind: input, shape index: {}]
  %s2 = inlined_call_operand.vmem [shape: f32[1,128], index: 2, kind: input, shape index: {}]
  %s3 = inlined_call_operand.hbm [shape: f32[8,128], index: 3, kind: output, shape index: {}]
  %s4 = sld [smem:[#allocation0]]
  $region22: #{tpu_custom_call.1} parent=0
    _
  %s6 = ssub.s32 1, %s4
  %s7 = scalar_select 0, %s6, %s4
  $region1: #{tpu_custom_call.1} parent=0
    #allocation2 [shape = 'u8[4096]{0}', space=vmem, size = 0x1000, scoped, tag = 'output window, operand 0, single buffered']
    #allocation3 [shape = 's32[1]{0}', space=sflag, size = 0x4, scoped, tag = 'scoped memory for tpu_custom_call.1']
    %8 = vsyncpa [#allocation3], 0
    // Predicated region
    $region2: #{tpu_custom_call.1} parent=1 // pred_check
      _
    $region3: #{tpu_custom_call.1} parent=1 // pred_check_branch
      %10 = sbr.rel (0) target = $region5
    $region4: #{tpu_custom_call.1} parent=1 // pred_region
      _
    $region5: #{tpu_custom_call.1} parent=1 // pred_fallthru
      _
    // Predicated region
    $region6: #{tpu_custom_call.1} parent=1 // pred_check
      _
    $region7: #{tpu_custom_call.1} parent=1 // pred_check_branch
      %12 = sbr.rel (0) target = $region9
    $region8: #{tpu_custom_call.1} parent=1 // pred_region
      _
    $region9: #{tpu_custom_call.1} parent=1 // pred_fallthru
      _
    // Predicated region
    $region10: #{tpu_custom_call.1} parent=1 // pred_check
      _
    $region11: #{tpu_custom_call.1} parent=1 // pred_check_branch
      %14 = sbr.rel (0) target = $region13
    $region12: #{tpu_custom_call.1} parent=1 // pred_region
      _
    $region13: #{tpu_custom_call.1} parent=1 // pred_fallthru
      _
    %v15 = vld [vmem:[%s0] sm:$0xff]
    %v16 = vld [vmem:[%s1] sm:$0xff]
    %v17 = vld [vmem:[%s1 + $0x8] sm:$0xff]
    %v18 = vld [vmem:[%s1 + $0x10] sm:$0xff]
    %v19 = vld [vmem:[%s1 + $0x18] sm:$0xff]
    %v20 = vld [vmem:[%s1 + $0x20] sm:$0xff]
    %v21 = vld [vmem:[%s1 + $0x28] sm:$0xff]
    %v22 = vld [vmem:[%s1 + $0x30] sm:$0xff]
    %v23 = vld [vmem:[%s1 + $0x38] sm:$0xff]
    %v24 = vld [vmem:[%s1 + $0x40] sm:$0xff]
    %v25 = vld [vmem:[%s1 + $0x48] sm:$0xff]
    %v26 = vld [vmem:[%s1 + $0x50] sm:$0xff]
    %v27 = vld [vmem:[%s1 + $0x58] sm:$0xff]
    %v28 = vld [vmem:[%s1 + $0x60] sm:$0xff]
    %v29 = vld [vmem:[%s1 + $0x68] sm:$0xff]
    %v30 = vld [vmem:[%s1 + $0x70] sm:$0xff]
    %v31 = vld [vmem:[%s1 + $0x78] sm:$0xff]
    %vm32 = vcmask 261120
    %v34 = vsel %vm32, %v15, 0
    %v37 = vsel %vm32, %v16, 0
    %v40 = vsel %vm32, %v17, 0
    %v43 = vsel %vm32, %v18, 0
    %v46 = vsel %vm32, %v19, 0
    %v49 = vsel %vm32, %v20, 0
    %v52 = vsel %vm32, %v21, 0
    %v55 = vsel %vm32, %v22, 0
    %v58 = vsel %vm32, %v23, 0
    %v61 = vsel %vm32, %v24, 0
    %v64 = vsel %vm32, %v25, 0
    %v67 = vsel %vm32, %v26, 0
    %v70 = vsel %vm32, %v27, 0
    %v73 = vsel %vm32, %v28, 0
    %v76 = vsel %vm32, %v29, 0
    %v79 = vsel %vm32, %v30, 0
    %v82 = vsel %vm32, %v31, 0
    %84 = vmatprep.subr.mxu0 0.0
    %85 = vmatpush1.xpose.msra.mxu0 %v37
    %86 = vmatprep.subr.mxu0 0.0
    %87 = vmatpush1.xpose.msra.mxu0 %v40
    %88 = vmatprep.subr.mxu0 0.0
    %89 = vmatpush1.xpose.msra.mxu0 %v43
    %90 = vmatprep.subr.mxu0 0.0
    %91 = vmatpush1.xpose.msra.mxu0 %v46
    %92 = vmatprep.subr.mxu0 0.0
    %93 = vmatpush1.xpose.msra.mxu0 %v49
    %94 = vmatprep.subr.mxu0 0.0
    %95 = vmatpush1.xpose.msra.mxu0 %v52
    %96 = vmatprep.subr.mxu0 0.0
    %97 = vmatpush1.xpose.msra.mxu0 %v55
    %98 = vmatprep.subr.mxu0 0.0
    %99 = vmatpush1.xpose.msra.mxu0 %v58
    %100 = vmatprep.subr.mxu0 0.0
    %101 = vmatpush1.xpose.msra.mxu0 %v61
    %102 = vmatprep.subr.mxu0 0.0
    %103 = vmatpush1.xpose.msra.mxu0 %v64
    %104 = vmatprep.subr.mxu0 0.0
    %105 = vmatpush1.xpose.msra.mxu0 %v67
    %106 = vmatprep.subr.mxu0 0.0
    %107 = vmatpush1.xpose.msra.mxu0 %v70
    %108 = vmatprep.subr.mxu0 0.0
    %109 = vmatpush1.xpose.msra.mxu0 %v73
    %110 = vmatprep.subr.mxu0 0.0
    %111 = vmatpush1.xpose.msra.mxu0 %v76
    %112 = vmatprep.subr.mxu0 0.0
    %113 = vmatpush1.xpose.msra.mxu0 %v79
    %114 = vmatprep.subr.mxu0 0.0
    %115 = vmatpush1.xpose.msra.mxu0 %v82
    %116 = vmatprep.subr.mxu0 0.0
    %117 = vmatpush1.xpose.msra.mxu0 0.0
    %118 = vmatprep.subr.mxu0 0.0
    %119 = vmatpush1.xpose.msra.mxu0 0.0
    %120 = vmatprep.subr.mxu0 0.0
    %121 = vmatpush1.xpose.msra.mxu0 0.0
    %122 = vmatprep.subr.mxu0 0.0
    %123 = vmatpush1.xpose.msra.mxu0 0.0
    %124 = vmatprep.subr.mxu0 0.0
    %125 = vmatpush1.xpose.msra.mxu0 0.0
    %126 = vmatprep.subr.mxu0 0.0
    %127 = vmatpush1.xpose.msra.mxu0 0.0
    %128 = vmatprep.subr.mxu0 0.0
    %129 = vmatpush1.xpose.msra.mxu0 0.0
    %130 = vmatprep.subr.mxu0 0.0
    %131 = vmatpush1.xpose.msra.mxu0 0.0
    %132 = vmatprep.subr.mxu0 0.0
    %133 = vmatpush1.xpose.msra.mxu0 0.0
    %134 = vmatprep.subr.mxu0 0.0
    %135 = vmatpush1.xpose.msra.mxu0 0.0
    %136 = vmatprep.subr.mxu0 0.0
    %137 = vmatpush1.xpose.msra.mxu0 0.0
    %138 = vmatprep.subr.mxu0 0.0
    %139 = vmatpush1.xpose.msra.mxu0 0.0
    %140 = vmatprep.subr.mxu0 0.0
    %141 = vmatpush1.xpose.msra.mxu0 0.0
    %142 = vmatprep.subr.mxu0 0.0
    %143 = vmatpush1.xpose.msra.mxu0 0.0
    %144 = vmatprep.subr.mxu0 0.0
    %145 = vmatpush1.xpose.msra.mxu0 0.0
    %146 = vmatprep.subr.mxu0 0.0
    %147 = vmatpush1.xpose.msra.mxu0 0.0
    %148 = vmatprep.mubr.f32.mxu0 0.0
    %149 = vmatmul.mubr.f32.gmra.mrb[0].mxu0 %v34
    %v150 = vpop.f32.mrb[0].mxu0
    %v151 = vadd.f32 0.0, %v150
    %v152 = vpop.f32.mrb[0].mxu0
    %153 = vdwg.mxu0
    %v154 = vmul.f32 %v151, 0.25
    %v155 = vld [vmem:[%s2] sm:$0x1]
    %v157 = vlaneseq
    %v158 = vshrl.u32 %v157, 7
    %v159 = vsub.s32 0, %v158
    %v160 = vrot.slane %v155, %v159
    %v162 = vadd.f32 %v154, %v160
    %163 = vst [vmem:[#allocation2] sm:$0xff] %v162
    // Predicated region
    $region14: #{tpu_custom_call.1} parent=1 // pred_check
      _
    $region15: #{tpu_custom_call.1} parent=1 // pred_check_branch
      %165 = sbr.rel (0) target = $region17
    $region16: #{tpu_custom_call.1} parent=1 // pred_region
      %s167 = ssub.s32 128, 128
      %168 = vsyncadd [#allocation3], %s167
      %s170 = sshll.u32 [#allocation2], 4
      %s171 = int_to_ptr.vmem [resolvable:$true] %s170
      %173 = dma.vmem_to_hbm [thread:$0]  %s171, 128, %s3, [#allocation3]
    $region17: #{tpu_custom_call.1} parent=1 // pred_fallthru
      _
    // Predicated region
    $region18: #{tpu_custom_call.1} parent=1 // pred_check
      _
    $region19: #{tpu_custom_call.1} parent=1 // pred_check_branch
      %175 = sbr.rel (0) target = $region21
    $region20: #{tpu_custom_call.1} parent=1 // pred_region
      %176 = dma.done [#allocation3], 128
    $region21: #{tpu_custom_call.1} parent=1 // pred_fallthru
      _
    %177 = vsyncpa [#allocation3], 1

</llo_original>
